<compile_context>
chip_gen: v7x
topology: tpu7x:2x2x1
jax: 0.10.0
libtpu: 0.0.40
codegen_flags: <defaults>
</compile_context>

<pallas_src>
import functools
import math

import jax
import jax.numpy as jnp
from jax import lax
from jax.experimental import pallas as pl
from jax.experimental.pallas import tpu as pltpu


def _round_up(n, m):
    return (n + m - 1) // m * m


def _vmem_capacity_bytes():
    """Physical VMEM per TensorCore, with a conservative (v7x-sized) fallback."""
    try:
        return int(pltpu.get_tpu_info().vmem_capacity_bytes)
    except Exception:
        return 64 * 1024 * 1024


def _vmem_limit_bytes(estimate, capacity):
    """Scoped VMEM limit: generous vs. the estimate, ~20% headroom vs. physical."""
    cap = int(capacity * 0.8)
    return int(min(cap, max(32 * 1024 * 1024, 2 * estimate)))


def _choose_linear_tiles(B, L, Din, Dout, capacity, w_itemsize):
    """Tile sizes for the linear path. Returns (bt, lt, tn, Dout_pad)."""
    Dout_p = _round_up(Dout, 128)

    # Per-block byte budgets (before double-buffering), scaled to physical VMEM.
    x_budget = min(6 << 20, max(512 << 10, capacity // 16))   # f32 x block
    h_budget = min(2 << 20, max(256 << 10, capacity // 32))   # f32 matmul chunk
    w_budget = min(16 << 20, max(2 << 20, capacity // 6))     # 2x-buffered weight slab

    # tn: output columns resident per step (multiple of 128). Large weights get a
    # D_out grid axis so only a (Din, tn) slab lives in VMEM at a time.
    tn = (w_budget // max(2 * Din * w_itemsize, 1)) // 128 * 128
    tn = max(128, min(Dout_p, tn))
    nd = pl.cdiv(Dout_p, tn)
    Dout_pad = nd * tn              # pad W/bias (small arrays) so tn tiles exactly

    min_bt = B if B < 8 else 8

    # lt: sequence rows per step. Multiple of 8 (layout-free reshapes) unless L<8.
    if L < 8:
        lt = L
    else:
        lt_cap = (L // 8) * 8
        fit = min(x_budget // max(min_bt * Din * 4, 1),
                  h_budget // max(min_bt * tn * 4, 1))
        lt = max(8, min(lt_cap, (fit // 8) * 8))

    # bt: batch rows per step. Multiple of 8, or the whole batch when B < 8.
    if B < 8:
        bt = B
    else:
        fit = min(x_budget // max(lt * Din * 4, 1),
                  h_budget // max(lt * tn * 4, 1))
        bt = min((B // 8) * 8, max(8, (fit // 8) * 8))

    # Keep >= 2 "parallel" grid steps when the shapes allow (v7x: 2 TCs/chip).
    if pl.cdiv(B, bt) * nd == 1:
        if B >= 16 and bt >= 16:
            bt = max(8, ((bt // 2) // 8) * 8)
        elif Dout_pad >= 256:
            tn = Dout_pad // 2 if (Dout_pad // 2) % 128 == 0 else 128
            nd = Dout_pad // tn
    return bt, lt, tn, Dout_pad


def _choose_pool_tiles(B, L, Din, capacity, x_itemsize):
    """Tile sizes for the linear=False (pure max over L) path."""
    x_budget = min(8 << 20, max(512 << 10, capacity // 12))
    min_bt = B if B < 8 else 8

    if L < 8:
        lt = L
    else:
        lt_cap = (L // 8) * 8
        fit = x_budget // max(min_bt * Din * x_itemsize, 1)
        lt = max(8, min(lt_cap, (fit // 8) * 8))

    if B < 8:
        bt = B
    else:
        fit = x_budget // max(lt * Din * x_itemsize, 1)
        bt = min((B // 8) * 8, max(8, (fit // 8) * 8))

    if pl.cdiv(B, bt) == 1 and B >= 16 and bt >= 16:
        bt = max(8, ((bt // 2) // 8) * 8)
    return bt, lt


def _linear_relu_maxpool_kernel(x_ref, w_ref, b_ref, o_ref, acc_ref, *,
                                seq_len, matmul_dtype):
    """One (batch-block i, dout-block j, seq-chunk l) grid step.

    x_ref:   (bt, lt, Din)  input dtype (f32)   -- streamed from HBM
    w_ref:   (Din, tn)      matmul dtype        -- resident across l
    b_ref:   (1, tn)        f32                 -- resident across l
    o_ref:   (bt, tn)       output dtype        -- written on the last l step
    acc_ref: (bt, tn)       f32 running max     -- VMEM scratch
    """
    l = pl.program_id(2)
    nl = pl.num_programs(2)
    bt, lt, din = x_ref.shape
    tn = o_ref.shape[1]

    @pl.when(l == 0)
    def _init():
        acc_ref[...] = jnp.full(acc_ref.shape, -jnp.inf, dtype=acc_ref.dtype)

    # Collapse (bt, lt) -> rows (layout-free: lt is a multiple of 8, or lt == L < 8),
    # cast in-register, one MXU matmul per step (f32 accumulation).
    x2 = x_ref[...].reshape(bt * lt, din).astype(matmul_dtype)
    h = jnp.dot(x2, w_ref[...], preferred_element_type=jnp.float32)  # (bt*lt, tn)
    h3 = h.reshape(bt, lt, tn)

    if seq_len % lt != 0:
        # Only the last seq chunk is partial: mask its garbage rows before the max.
        pos = l * lt + lax.broadcasted_iota(jnp.int32, (bt, lt, tn), 1)
        h3 = jnp.where(pos < seq_len, h3, -jnp.inf)

    acc_ref[...] = jnp.maximum(acc_ref[...], jnp.max(h3, axis=1))

    @pl.when(l == nl - 1)
    def _finalize():
        # bias + ReLU hoisted after the max: t -> relu(t + b) is monotone, so
        # max_l relu(h_l + b) == relu(max_l h_l + b); done on a (bt, tn) tile only.
        o_ref[...] = jnp.maximum(acc_ref[...] + b_ref[...], 0.0).astype(o_ref.dtype)


def _maxpool_kernel(x_ref, o_ref, acc_ref, *, seq_len):
    """linear=False path: running max over the sequence axis."""
    l = pl.program_id(1)
    nl = pl.num_programs(1)
    lt = x_ref.shape[1]

    @pl.when(l == 0)
    def _init():
        acc_ref[...] = jnp.full(acc_ref.shape, -jnp.inf, dtype=acc_ref.dtype)

    xb = x_ref[...].astype(jnp.float32)
    if seq_len % lt != 0:
        pos = l * lt + lax.broadcasted_iota(jnp.int32, xb.shape, 1)
        xb = jnp.where(pos < seq_len, xb, -jnp.inf)

    acc_ref[...] = jnp.maximum(acc_ref[...], jnp.max(xb, axis=1))

    @pl.when(l == nl - 1)
    def _finalize():
        o_ref[...] = acc_ref[...].astype(o_ref.dtype)


def length_max_pool_1d(x, weight=None, bias=None, *, linear=False,
                       matmul_dtype=jnp.bfloat16):
    """Pallas TPU implementation of LengthMaxPool1D.forward.

    x:      (B, L, D_in)
    weight: (D_out, D_in)   (PyTorch nn.Linear convention), required if linear
    bias:   (D_out,)        required if linear
    Returns (B, D_out) if linear else (B, D_in).

    matmul_dtype: dtype of the MXU matmul inputs (accumulation is always f32).
      bf16 (default) halves weight traffic / MXU time but adds ~1e-2 relative
      error vs. the f32 PyTorch module; pass jnp.float32 for full precision.
    """
    B, L, Din = x.shape
    out_dtype = x.dtype
    capacity = _vmem_capacity_bytes()

    if not linear:
        bt, lt = _choose_pool_tiles(B, L, Din, capacity, x.dtype.itemsize)
        grid = (pl.cdiv(B, bt), pl.cdiv(L, lt))
        est = (2 * bt * lt * Din * x.dtype.itemsize   # x blocks (double-buffered)
               + 2 * bt * Din * out_dtype.itemsize    # output blocks
               + bt * Din * 4)                        # running-max scratch
        out = pl.pallas_call(
            functools.partial(_maxpool_kernel, seq_len=L),
            out_shape=jax.ShapeDtypeStruct((B, Din), out_dtype),
            grid_spec=pltpu.PrefetchScalarGridSpec(
                num_scalar_prefetch=0,
                grid=grid,
                in_specs=[pl.BlockSpec((bt, lt, Din), lambda i, l: (i, l, 0))],
                out_specs=pl.BlockSpec((bt, Din), lambda i, l: (i, 0)),
                scratch_shapes=[pltpu.VMEM((bt, Din), jnp.float32)],
            ),
            compiler_params=pltpu.CompilerParams(
                dimension_semantics=("parallel", "arbitrary"),
                vmem_limit_bytes=_vmem_limit_bytes(est, capacity),
            ),
        )(x)
        return out

    assert weight is not None and bias is not None
    Dout, w_in = weight.shape
    assert w_in == Din, (weight.shape, x.shape)
    w_itemsize = jnp.dtype(matmul_dtype).itemsize
    bt, lt, tn, Dout_pad = _choose_linear_tiles(B, L, Din, Dout, capacity,
                                                w_itemsize)

    # Weight / bias prep (small arrays, one-time pass): transpose to (Din, Dout),
    # cast to the matmul dtype, pad D_out so lane-dense tn-wide blocks tile it.
    w_t = jnp.transpose(weight).astype(matmul_dtype)
    b2 = bias.astype(jnp.float32).reshape(1, Dout)
    if Dout_pad != Dout:
        w_t = jnp.pad(w_t, ((0, 0), (0, Dout_pad - Dout)))
        b2 = jnp.pad(b2, ((0, 0), (0, Dout_pad - Dout)))

    grid = (pl.cdiv(B, bt), Dout_pad // tn, pl.cdiv(L, lt))
    est = (2 * bt * lt * Din * x.dtype.itemsize   # x blocks (double-buffered)
           + 2 * Din * tn * w_itemsize            # weight slab
           + 2 * tn * 4                           # bias slab
           + 2 * bt * tn * out_dtype.itemsize     # output blocks
           + bt * tn * 4                          # running-max scratch
           + bt * lt * tn * 4)                    # f32 matmul chunk (headroom)

    out = pl.pallas_call(
        functools.partial(_linear_relu_maxpool_kernel, seq_len=L,
                          matmul_dtype=matmul_dtype),
        out_shape=jax.ShapeDtypeStruct((B, Dout_pad), out_dtype),
        grid_spec=pltpu.PrefetchScalarGridSpec(
            num_scalar_prefetch=0,
            grid=grid,
            in_specs=[
                pl.BlockSpec((bt, lt, Din), lambda i, j, l: (i, l, 0)),
                pl.BlockSpec((Din, tn), lambda i, j, l: (0, j)),
                pl.BlockSpec((1, tn), lambda i, j, l: (0, j)),
            ],
            out_specs=pl.BlockSpec((bt, tn), lambda i, j, l: (i, j)),
            scratch_shapes=[pltpu.VMEM((bt, tn), jnp.float32)],
        ),
        compiler_params=pltpu.CompilerParams(
            dimension_semantics=("parallel", "parallel", "arbitrary"),
            vmem_limit_bytes=_vmem_limit_bytes(est, capacity),
        ),
    )(x, w_t, b2)
    return out[:, :Dout] if Dout_pad != Dout else out


def _reference(x, weight=None, bias=None, *, linear=False):
    if linear:
        x = jax.nn.relu(jnp.einsum("bld,od->blo", x, weight) + bias)
    return jnp.max(x, axis=1)


if __name__ == "__main__":
    # Small shapes consistent with the module: batch=2, seq=8, in_dim=32, out_dim=32.
    B, L, Din, Dout = 2, 8, 32, 32

    key = jax.random.PRNGKey(0)
    kx, kw, kb = jax.random.split(key, 3)
    x = jax.random.normal(kx, (B, L, Din), dtype=jnp.float32)
    # nn.Linear-style init: U(-1/sqrt(in_dim), 1/sqrt(in_dim)).
    bound = 1.0 / math.sqrt(Din)
    weight = jax.random.uniform(kw, (Dout, Din), jnp.float32, -bound, bound)
    bias = jax.random.uniform(kb, (Dout,), jnp.float32, -bound, bound)

    # 1) linear=True, default bf16 matmul. Tight check vs. a reference with the
    #    same bf16 input quantization (isolates kernel correctness), loose check
    #    vs. the pure-f32 reference (documents the bf16 quantization error).
    y = jax.block_until_ready(length_max_pool_1d(x, weight, bias, linear=True))
    assert y.shape == (B, Dout)
    y_ref = _reference(x, weight, bias, linear=True)
    x_q = x.astype(jnp.bfloat16).astype(jnp.float32)
    w_q = weight.astype(jnp.bfloat16).astype(jnp.float32)
    y_qref = _reference(x_q, w_q, bias, linear=True)
    assert jnp.allclose(y, y_qref, atol=1e-3, rtol=1e-3), float(
        jnp.max(jnp.abs(y - y_qref)))
    assert jnp.allclose(y, y_ref, atol=5e-2, rtol=5e-2), float(
        jnp.max(jnp.abs(y - y_ref)))

    # 2) linear=True, f32 matmul path (loose tolerance: the MXU may quantize f32
    #    matmul inputs under the default precision).
    y32 = jax.block_until_ready(
        length_max_pool_1d(x, weight, bias, linear=True,
                           matmul_dtype=jnp.float32))
    assert y32.shape == (B, Dout)
    assert jnp.allclose(y32, y_ref, atol=3e-2, rtol=3e-2), float(
        jnp.max(jnp.abs(y32 - y_ref)))

    # 3) linear=False: exact max over the sequence axis.
    z = jax.block_until_ready(length_max_pool_1d(x, linear=False))
    assert z.shape == (B, Din)
    z_ref = _reference(x, linear=False)
    assert jnp.allclose(z, z_ref, atol=1e-6, rtol=1e-6), float(
        jnp.max(jnp.abs(z - z_ref)))

    print("KERNEL_OK")
</pallas_src>

<mosaic_0001>
module attributes {stable_mosaic.version = 11 : i64} {
  func.func @_linear_relu_maxpool_kernel(%arg0: i32, %arg1: i32, %arg2: i32, %arg3: memref<2x8x32xf32, #tpu.memory_space<vmem>>, %arg4: memref<32x128xbf16, #tpu.memory_space<vmem>>, %arg5: memref<1x128xf32, #tpu.memory_space<vmem>>, %arg6: memref<2x128xf32, #tpu.memory_space<vmem>>, %arg7: memref<2x128xf32, #tpu.memory_space<vmem>>) attributes {dimension_semantics = [#tpu.dimension_semantics<parallel>, #tpu.dimension_semantics<parallel>, #tpu.dimension_semantics<arbitrary>], iteration_bounds = array<i64: 1, 1, 1>, scalar_prefetch = 0 : i64, scratch_operands = 1 : i64, tpu.core_type = #tpu.core_type<tc>, window_params = [{transform_indices = @transform_0, window_bounds = array<i64: 2, 8, 32>}, {transform_indices = @transform_1, window_bounds = array<i64: 32, 128>}, {transform_indices = @transform_2, window_bounds = array<i64: 1, 128>}, {transform_indices = @transform_3, window_bounds = array<i64: 2, 128>}]} {
    %c0_i32 = arith.constant 0 : i32
    %0 = arith.cmpi eq, %arg2, %c0_i32 : i32
    %1 = arith.extui %0 : i1 to i32
    %c0_i32_0 = arith.constant 0 : i32
    %2 = arith.cmpi ne, %1, %c0_i32_0 : i32
    scf.if %2 {
      %cst_12 = arith.constant 0xFF800000 : f32
      %16 = vector.broadcast %cst_12 : f32 to vector<2x128xf32>
      %c0_13 = arith.constant 0 : index
      %c0_14 = arith.constant 0 : index
      %17 = vector.load %arg7[%c0_13, %c0_14] : memref<2x128xf32, #tpu.memory_space<vmem>>, vector<2x128xf32>
      tpu.vector_store %arg7[%c0_13, %c0_14], %16 {strides = array<i32>} : memref<2x128xf32, #tpu.memory_space<vmem>>, vector<2x128xf32>,
    } else {
    }
    %c0 = arith.constant 0 : index
    %c0_1 = arith.constant 0 : index
    %c0_2 = arith.constant 0 : index
    %3 = vector.load %arg3[%c0, %c0_1, %c0_2] : memref<2x8x32xf32, #tpu.memory_space<vmem>>, vector<2x8x32xf32>
    %4 = vector.shape_cast %3 : vector<2x8x32xf32> to vector<16x32xf32>
    %5 = arith.truncf %4 : vector<16x32xf32> to vector<16x32xbf16>
    %c0_3 = arith.constant 0 : index
    %c0_4 = arith.constant 0 : index
    %6 = vector.load %arg4[%c0_3, %c0_4] : memref<32x128xbf16, #tpu.memory_space<vmem>>, vector<32x128xbf16>
    %cst = arith.constant dense<0.000000e+00> : vector<16x128xf32>
    %7 = tpu.matmul %5, %6, %cst {dimension_numbers = #tpu.dot_dimension_numbers<[1], [0], [0], [1], [0, 0, 1, 1], [], []>} : vector<16x32xbf16>, vector<32x128xbf16>, vector<16x128xf32> -> vector<16x128xf32>
    %8 = vector.shape_cast %7 : vector<16x128xf32> to vector<2x8x128xf32>
    %c0_5 = arith.constant 0 : index
    %c0_6 = arith.constant 0 : index
    %9 = vector.load %arg7[%c0_5, %c0_6] : memref<2x128xf32, #tpu.memory_space<vmem>>, vector<2x128xf32>
    %cst_7 = arith.constant dense<0xFF800000> : vector<2x128xf32>
    %10 = vector.multi_reduction <maximumf>, %8, %cst_7 [1] : vector<2x8x128xf32> to vector<2x128xf32>
    %11 = arith.maximumf %9, %10 : vector<2x128xf32>
    %c0_8 = arith.constant 0 : index
    %c0_9 = arith.constant 0 : index
    %12 = vector.load %arg7[%c0_8, %c0_9] : memref<2x128xf32, #tpu.memory_space<vmem>>, vector<2x128xf32>
    tpu.vector_store %arg7[%c0_8, %c0_9], %11 {strides = array<i32>} : memref<2x128xf32, #tpu.memory_space<vmem>>, vector<2x128xf32>,
    %c0_i32_10 = arith.constant 0 : i32
    %13 = arith.cmpi eq, %arg2, %c0_i32_10 : i32
    %14 = arith.extui %13 : i1 to i32
    %c0_i32_11 = arith.constant 0 : i32
    %15 = arith.cmpi ne, %14, %c0_i32_11 : i32
    scf.if %15 {
      %c0_12 = arith.constant 0 : index
      %c0_13 = arith.constant 0 : index
      %16 = vector.load %arg7[%c0_12, %c0_13] : memref<2x128xf32, #tpu.memory_space<vmem>>, vector<2x128xf32>
      %c0_14 = arith.constant 0 : index
      %c0_15 = arith.constant 0 : index
      %17 = vector.load %arg5[%c0_14, %c0_15] : memref<1x128xf32, #tpu.memory_space<vmem>>, vector<1x128xf32>
      %18 = vector.broadcast %17 : vector<1x128xf32> to vector<2x128xf32>
      %19 = arith.addf %16, %18 : vector<2x128xf32>
      %cst_16 = arith.constant 0.000000e+00 : f32
      %20 = vector.broadcast %cst_16 : f32 to vector<2x128xf32>
      %21 = arith.maximumf %19, %20 : vector<2x128xf32>
      %c0_17 = arith.constant 0 : index
      %c0_18 = arith.constant 0 : index
      %22 = vector.load %arg6[%c0_17, %c0_18] : memref<2x128xf32, #tpu.memory_space<vmem>>, vector<2x128xf32>
      tpu.vector_store %arg6[%c0_17, %c0_18], %21 {strides = array<i32>} : memref<2x128xf32, #tpu.memory_space<vmem>>, vector<2x128xf32>,
    } else {
    }
    return
  }
  func.func @transform_0(%arg0: i32, %arg1: i32, %arg2: i32) -> (i32, i32, i32) {
    %c0_i32 = arith.constant 0 : i32
    %c0_i32_0 = arith.constant 0 : i32
    return %arg0, %arg2, %c0_i32 : i32, i32, i32
  }
  func.func @transform_1(%arg0: i32, %arg1: i32, %arg2: i32) -> (i32, i32) {
    %c0_i32 = arith.constant 0 : i32
    %c0_i32_0 = arith.constant 0 : i32
    return %c0_i32, %arg1 : i32, i32
  }
  func.func @transform_2(%arg0: i32, %arg1: i32, %arg2: i32) -> (i32, i32) {
    %c0_i32 = arith.constant 0 : i32
    %c0_i32_0 = arith.constant 0 : i32
    return %c0_i32, %arg1 : i32, i32
  }
  func.func @transform_3(%arg0: i32, %arg1: i32, %arg2: i32) -> (i32, i32) {
    %c0_i32 = arith.constant 0 : i32
    return %arg0, %arg1 : i32, i32
  }
}

</mosaic_0001>

<llo_original>
// kernel: tpu_custom_call.1
$region0: #{tpu_custom_call.1}
  #allocation0 [shape = 'u32[]', space=smem, size = 0x4, offset = 0x4, fixed_abs, tag = 'smem constant byte address 0x4 - core index']
  #allocation1 [shape = 'u32[144,128]{1,0:T(1,128)}', space=vmem, size = 0x12000, scoped, tag = 'internal scratch']
  #allocation2 [shape = 'f32[2,128]{1,0:T(2,128)}', space=vmem, size = 0x400, scoped, tag = 'scratch operand']
  %s0 = inlined_call_operand.hbm [shape: f32[2,8,32], index: 0, kind: input, shape index: {}]
  %s1 = inlined_call_operand.hbm [shape: bf16[32,128], index: 1, kind: input, shape index: {}]
  %s2 = inlined_call_operand.vmem [shape: f32[1,128], index: 2, kind: input, shape index: {}]
  %s3 = inlined_call_operand.hbm [shape: f32[2,128], index: 3, kind: output, shape index: {}]
  %s4 = sld [smem:[#allocation0]]
  $region38: #{tpu_custom_call.1} parent=0
    _
  %s6 = ssub.s32 1, %s4
  %s7 = scalar_select 0, %s6, %s4
  $region1: #{tpu_custom_call.1} parent=0
    #allocation3 [shape = 'u8[8192]{0}', space=vmem, size = 0x2000, scoped, tag = 'input window, operand 0, single buffered']
    #allocation4 [shape = 's32[1]{0}', space=sflag, size = 0x4, scoped, tag = 'scoped memory for tpu_custom_call.1']
    #allocation5 [shape = 's32[1]{0}', space=sflag, size = 0x4, scoped, tag = 'scoped memory for tpu_custom_call.1']
    #allocation6 [shape = 'u8[8192]{0}', space=vmem, size = 0x2000, scoped, tag = 'input window, operand 1, single buffered']
    #allocation7 [shape = 's32[1]{0}', space=sflag, size = 0x4, scoped, tag = 'scoped memory for tpu_custom_call.1']
    #allocation8 [shape = 'u8[1024]{0}', space=vmem, size = 0x400, scoped, tag = 'output window, operand 0, single buffered']
    %8 = vsyncpa [#allocation4], 0
    %9 = vsyncpa [#allocation7], 0
    %10 = vsyncpa [#allocation5], 0
    // Predicated region
    $region2: #{tpu_custom_call.1} parent=1 // pred_check
      _
    $region3: #{tpu_custom_call.1} parent=1 // pred_check_branch
      %12 = sbr.rel (0) target = $region5
    $region4: #{tpu_custom_call.1} parent=1 // pred_region
      %s14 = ssub.s32 256, 256
      %15 = vsyncadd [#allocation4], %s14
      %s16 = sshll.u32 [#allocation3], 4
      %s17 = int_to_ptr.vmem [resolvable:$true] %s16
      %22 = dma.hbm_to_vmem [thread:$0]  %s0, 256, %s17, [#allocation4], 128, 128, 8
    $region5: #{tpu_custom_call.1} parent=1 // pred_fallthru
      _
    // Predicated region
    $region6: #{tpu_custom_call.1} parent=1 // pred_check
      _
    $region7: #{tpu_custom_call.1} parent=1 // pred_check_branch
      %24 = sbr.rel (0) target = $region9
    $region8: #{tpu_custom_call.1} parent=1 // pred_region
      %s26 = ssub.s32 256, 256
      %27 = vsyncadd [#allocation7], %s26
      %s28 = sshll.u32 [#allocation6], 4
      %s29 = int_to_ptr.vmem [resolvable:$true] %s28
      %34 = dma.hbm_to_vmem [thread:$0]  %s1, 256, %s29, [#allocation7], 64, 64, 4
    $region9: #{tpu_custom_call.1} parent=1 // pred_fallthru
      _
    // Predicated region
    $region10: #{tpu_custom_call.1} parent=1 // pred_check
      _
    $region11: #{tpu_custom_call.1} parent=1 // pred_check_branch
      %36 = sbr.rel (0) target = $region13
    $region12: #{tpu_custom_call.1} parent=1 // pred_region
      _
    $region13: #{tpu_custom_call.1} parent=1 // pred_fallthru
      _
    // Predicated region
    $region14: #{tpu_custom_call.1} parent=1 // pred_check
      _
    $region15: #{tpu_custom_call.1} parent=1 // pred_check_branch
      %38 = sbr.rel (0) target = $region17
    $region16: #{tpu_custom_call.1} parent=1 // pred_region
      %39 = dma.done [#allocation4], 256
    $region17: #{tpu_custom_call.1} parent=1 // pred_fallthru
      _
    // Predicated region
    $region18: #{tpu_custom_call.1} parent=1 // pred_check
      _
    $region19: #{tpu_custom_call.1} parent=1 // pred_check_branch
      %41 = sbr.rel (0) target = $region21
    $region20: #{tpu_custom_call.1} parent=1 // pred_region
      %42 = dma.done [#allocation7], 256
    $region21: #{tpu_custom_call.1} parent=1 // pred_fallthru
      _
    %p44 = scmp.eq.s32.totalorder 0, 0
    // Predicated region
    $region22: #{tpu_custom_call.1} parent=1 // pred_check
      %p45 = pneg %p44
    $region23: #{tpu_custom_call.1} parent=1 // pred_check_branch
      %47 = sbr.rel (%p45) target = $region25
    $region24: #{tpu_custom_call.1} parent=1 // pred_region
      %48 = vst [vmem:[#allocation2] sm:$0x3] -inf
    $region25: #{tpu_custom_call.1} parent=1 // pred_fallthru
      _
    %v49 = vld [vmem:[#allocation3] sm:$0xff]
    %v50 = vld [vmem:[#allocation3 + $0x8] sm:$0xff]
    %v51 = vpack.c.bf16 %v50, %v49
    %v52 = vld [vmem:[#allocation6] sm:$0xf]
    %v53 = vld [vmem:[#allocation6 + $0x4] sm:$0xf]
    %v54 = vld [vmem:[#allocation6 + $0x8] sm:$0xf]
    %v55 = vld [vmem:[#allocation6 + $0xc] sm:$0xf]
    %v60 = vunpack.c.l.b16 %v52
    %v61 = vunpack.c.l.b16 %v53
    %v62 = vunpack.c.l.b16 %v54
    %v63 = vunpack.c.l.b16 %v55
    %v64 = vpack.c.b16 %v61, %v60
    %v65 = vpack.c.b16 %v63, %v62
    %vm68 = vcmask 261120
    %v70 = vsel %vm68, %v51, 0
    %72 = vmatprep.subr.bf16.mxu0 0
    %73 = vmatpush1.bf16.msra.mxu0 %v64
    %74 = vmatprep.subr.bf16.mxu0 0
    %75 = vmatpush1.bf16.msra.mxu0 %v65
    %76 = vmatprep.subr.bf16.mxu0 0
    %77 = vmatpush1.bf16.msra.mxu0 0
    %78 = vmatprep.subr.bf16.mxu0 0
    %79 = vmatpush1.bf16.msra.mxu0 0
    %80 = vmatprep.subr.bf16.mxu0 0
    %81 = vmatpush1.bf16.msra.mxu0 0
    %82 = vmatprep.subr.bf16.mxu0 0
    %83 = vmatpush1.bf16.msra.mxu0 0
    %84 = vmatprep.subr.bf16.mxu0 0
    %85 = vmatpush1.bf16.msra.mxu0 0
    %86 = vmatprep.subr.bf16.mxu0 0
    %87 = vmatpush1.bf16.msra.mxu0 0
    %88 = vmatprep.subr.bf16.mxu0 0
    %89 = vmatpush1.bf16.msra.mxu0 0
    %90 = vmatprep.subr.bf16.mxu0 0
    %91 = vmatpush1.bf16.msra.mxu0 0
    %92 = vmatprep.subr.bf16.mxu0 0
    %93 = vmatpush1.bf16.msra.mxu0 0
    %94 = vmatprep.subr.bf16.mxu0 0
    %95 = vmatpush1.bf16.msra.mxu0 0
    %96 = vmatprep.subr.bf16.mxu0 0
    %97 = vmatpush1.bf16.msra.mxu0 0
    %98 = vmatprep.subr.bf16.mxu0 0
    %99 = vmatpush1.bf16.msra.mxu0 0
    %100 = vmatprep.subr.bf16.mxu0 0
    %101 = vmatpush1.bf16.msra.mxu0 0
    %102 = vmatprep.subr.bf16.mxu0 0
    %103 = vmatpush1.bf16.msra.mxu0 0
    %104 = vmatprep.mubr.bf16.mxu0 0
    %105 = vmatmul.mubr.bf16.gmra.mrb[0].mxu0 %v70
    %v106 = vpop.f32.mrb[0].mxu0
    %v107 = vadd.f32 0.0, %v106
    %v108 = vpop.f32.mrb[0].mxu0
    %v109 = vpop.f32.mrb[0].mxu0
    %v110 = vadd.f32 0.0, %v109
    %v111 = vpop.f32.mrb[0].mxu0
    %112 = vdwg.mxu0
    %v113 = vld [vmem:[#allocation2] sm:$0x3]
    %v114 = vrot.slane %v107, 4
    %v115 = vmax.f32 %v107, %v114
    %v116 = vrot.slane %v115, 2
    %v117 = vmax.f32 %v115, %v116
    %v118 = vrot.slane %v117, 1
    %v119 = vmax.f32 %v117, %v118
    %v120 = vrot.slane %v110, 4
    %v121 = vmax.f32 %v110, %v120
    %v122 = vrot.slane %v121, 2
    %v123 = vmax.f32 %v121, %v122
    %v124 = vrot.slane %v123, 1
    %v125 = vmax.f32 %v123, %v124
    %vm128 = vcmask 1041409
    %v129 = vsel %vm128, %v125, %v119
    %v131 = vmax.f32 %v113, %v129
    %132 = vst [vmem:[#allocation2] sm:$0x3] %v131
    // Predicated region
    $region26: #{tpu_custom_call.1} parent=1 // pred_check
      %p133 = pneg %p44
    $region27: #{tpu_custom_call.1} parent=1 // pred_check_branch
      %135 = sbr.rel (%p133) target = $region29
    $region28: #{tpu_custom_call.1} parent=1 // pred_region
      %v136 = vld [vmem:[#allocation2] sm:$0x3]
      %v137 = vld [vmem:[%s2] sm:$0x1]
      %v139 = vlaneseq
      %v140 = vshrl.u32 %v139, 7
      %v141 = vsub.s32 0, %v140
      %v142 = vrot.slane %v137, %v141
      %v144 = vadd.f32 %v136, %v142
      %v145 = vmax.f32 %v144, 0.0
      %146 = vst [vmem:[#allocation8] sm:$0x3] %v145
    $region29: #{tpu_custom_call.1} parent=1 // pred_fallthru
      _
    // Predicated region
    $region30: #{tpu_custom_call.1} parent=1 // pred_check
      _
    $region31: #{tpu_custom_call.1} parent=1 // pred_check_branch
      %148 = sbr.rel (0) target = $region33
    $region32: #{tpu_custom_call.1} parent=1 // pred_region
      %s150 = ssub.s32 32, 32
      %151 = vsyncadd [#allocation5], %s150
      %s153 = sshll.u32 [#allocation8], 4
      %s154 = int_to_ptr.vmem [resolvable:$true] %s153
      %156 = dma.vmem_to_hbm [thread:$0]  %s154, 32, %s3, [#allocation5]
    $region33: #{tpu_custom_call.1} parent=1 // pred_fallthru
      _
    // Predicated region
    $region34: #{tpu_custom_call.1} parent=1 // pred_check
      _
    $region35: #{tpu_custom_call.1} parent=1 // pred_check_branch
      %158 = sbr.rel (0) target = $region37
    $region36: #{tpu_custom_call.1} parent=1 // pred_region
      %159 = dma.done [#allocation5], 32
    $region37: #{tpu_custom_call.1} parent=1 // pred_fallthru
      _
    %160 = vsyncpa [#allocation4], 1
    %161 = vsyncpa [#allocation7], 1
    %162 = vsyncpa [#allocation5], 1

</llo_original>
